<compile_context>
chip_gen: v5e
topology: v5e:2x2
jax: 0.10.0
libtpu: 0.0.40
codegen_flags: <defaults>
</compile_context>

<pallas_src>
import functools

import jax
import jax.numpy as jnp
import numpy as np
from jax.experimental import pallas as pl
from jax.experimental.pallas import tpu as pltpu


# ----------------------------------------------------------------------------
# Static network dimensions for this DNN instantiation.
# ----------------------------------------------------------------------------
H1 = W1 = 16
C1_IN, C1_OUT = 4, 8
H2 = W2 = 8
C2_IN, C2_OUT = 8, 16
H3 = W3 = 4
FC1_IN, FC1_OUT = H3 * W3 * C2_OUT, 32        # 256, 32
FC2_OUT = 10
K = 3                                         # conv kernel size (odd, SAME, stride 1)
LANES = 128                                   # lane-dense plane width used throughout


# ----------------------------------------------------------------------------
# The single fused kernel: whole forward pass for one batch block, all
# intermediates in VMEM scratch.
# ----------------------------------------------------------------------------
def _dnn_kernel(x_ref, w1_ref, b1_ref, w2_ref, b2_ref,
                m1_ref, fb1_ref, m2_ref, fb2_ref,
                o_ref,
                c1_ref, p2_ref, c2_ref, p4_ref):
    bn = x_ref.shape[0]
    f32 = jnp.float32

    # ---- conv1 (3x3 SAME) + ReLU: ONE banded MXU matmul ---------------------
    # x_ref is the vertically padded plane (BN, 18, 128); lanes = w*4 + c
    # (lanes >= 64 are zero).  Horizontal padding lives in zero rows of w1_ref.
    taps = [x_ref[:, kh:kh + H1, :].reshape(bn * H1, LANES) for kh in range(K)]
    patches = jnp.concatenate(taps, axis=-1)                        # (BN*16, 384)
    a1 = jnp.dot(patches, w1_ref[...], preferred_element_type=f32)  # (BN*16, 128)
    c1_ref[...] = jnp.maximum(a1 + b1_ref[...], 0.0)                # lanes = w*8 + co

    # ---- maxpool1 2x2: stride-2 sublane reads (rows) + lane roll (columns) --
    rmax = jnp.maximum(c1_ref[pl.ds(0, bn * H2, stride=2), :],
                       c1_ref[pl.ds(1, bn * H2, stride=2), :])      # (BN*8, 128)
    pool1 = jnp.maximum(rmax, pltpu.roll(rmax, shift=LANES - C1_OUT, axis=1))
    # Pooled values sit at lanes 16*w + c; the odd 8-lane groups are junk and
    # are masked by zero columns in the conv2 banded weight.  Only the two
    # vertical halo rows get zeroed (no full-plane memset).
    p2_ref[:, 0:1, :] = jnp.zeros((bn, 1, LANES), f32)
    p2_ref[:, H2 + 1:H2 + 2, :] = jnp.zeros((bn, 1, LANES), f32)
    p2_ref[:, 1:H2 + 1, :] = pool1.reshape(bn, H2, LANES)

    # ---- conv2 (3x3 SAME) + ReLU: ONE banded MXU matmul ---------------------
    taps = [p2_ref[:, kh:kh + H2, :].reshape(bn * H2, LANES) for kh in range(K)]
    patches = jnp.concatenate(taps, axis=-1)                        # (BN*8, 384)
    a2 = jnp.dot(patches, w2_ref[...], preferred_element_type=f32)  # (BN*8, 128)
    c2_ref[...] = jnp.maximum(a2 + b2_ref[...], 0.0)                # lanes = w*16 + c

    # ---- maxpool2 2x2 --------------------------------------------------------
    rmax = jnp.maximum(c2_ref[pl.ds(0, bn * H3, stride=2), :],
                       c2_ref[pl.ds(1, bn * H3, stride=2), :])      # (BN*4, 128)
    p4_ref[...] = jnp.maximum(rmax, pltpu.roll(rmax, shift=LANES - C2_OUT, axis=1))

    # ---- flatten + fc1 + ReLU + fc2 (NCHW flatten order folded into m1) -----
    segs = [p4_ref[pl.ds(h, bn, stride=H3), :] for h in range(H3)]  # 4 x (BN, 128)
    feats = jnp.concatenate(segs, axis=-1)                          # (BN, 512)
    h1 = jnp.dot(feats, m1_ref[...], preferred_element_type=f32) + fb1_ref[...]
    h1 = jnp.maximum(h1, 0.0)                                       # (BN, 32)
    logits = jnp.dot(h1, m2_ref[...], preferred_element_type=f32) + fb2_ref[...]
    o_ref[...] = logits.astype(o_ref.dtype)


def dnn_fused_call(x_plane, p):
    n = x_plane.shape[0]
    bn = 8 if (n > 8 and n % 8 == 0) else n      # batch block (multiple of 8 when tiled)
    assert n % bn == 0
    return pl.pallas_call(
        _dnn_kernel,
        out_shape=jax.ShapeDtypeStruct((n, FC2_OUT), jnp.float32),
        grid=(n // bn,),
        in_specs=[
            pl.BlockSpec((bn, H1 + 2, LANES), lambda i: (i, 0, 0)),    # padded input plane
            pl.BlockSpec((K * LANES, W1 * C1_OUT), lambda i: (0, 0)),  # banded conv1 weight
            pl.BlockSpec((1, W1 * C1_OUT), lambda i: (0, 0)),          # conv1 bias (per lane)
            pl.BlockSpec((K * LANES, W2 * C2_OUT), lambda i: (0, 0)),  # banded conv2 weight
            pl.BlockSpec((1, W2 * C2_OUT), lambda i: (0, 0)),          # conv2 bias (per lane)
            pl.BlockSpec((H3 * LANES, FC1_OUT), lambda i: (0, 0)),     # folded fc1 weight
            pl.BlockSpec((1, FC1_OUT), lambda i: (0, 0)),              # fc1 bias
            pl.BlockSpec((FC1_OUT, FC2_OUT), lambda i: (0, 0)),        # fc2 weight
            pl.BlockSpec((1, FC2_OUT), lambda i: (0, 0)),              # fc2 bias
        ],
        out_specs=pl.BlockSpec((bn, FC2_OUT), lambda i: (i, 0)),
        scratch_shapes=[
            pltpu.VMEM((bn * H1, LANES), jnp.float32),     # conv1+ReLU plane
            pltpu.VMEM((bn, H2 + 2, LANES), jnp.float32),  # conv2 input plane (v-padded)
            pltpu.VMEM((bn * H2, LANES), jnp.float32),     # conv2+ReLU plane
            pltpu.VMEM((bn * H3, LANES), jnp.float32),     # pool2 plane
        ],
        compiler_params=pltpu.CompilerParams(
            dimension_semantics=("parallel",)),
    )(x_plane, p["w1b"], p["b1l"], p["w2b"], p["b2l"],
      p["m1"], p["fb1"], p["m2"], p["fb2"])


# ----------------------------------------------------------------------------
# One-time (init-time) weight rearrangements.
# ----------------------------------------------------------------------------
def _banded_conv_weight(k_hwio, w_out, c_in, c_out, lane_stride):
    """Fold a 3x3 conv's horizontal taps + horizontal SAME zero-padding +
    channel mixing into one (3*128, w_out*c_out) banded matrix.  The input
    plane's lane for spatial column wi / channel c is lane_stride*wi + c; all
    other lanes (zero padding or interleaved pooling junk) get zero rows.
    Output lane for (w, co) is c_out*w + co."""
    k = np.asarray(k_hwio, np.float32)                    # (3, 3, c_in, c_out) HWIO
    m = np.zeros((K, LANES, w_out, c_out), np.float32)
    for kh in range(K):
        for kw in range(K):
            for w in range(w_out):
                wi = w + kw - 1
                if 0 <= wi < w_out:
                    for c in range(c_in):
                        m[kh, lane_stride * wi + c, w, :] = k[kh, kw, c, :]
    return jnp.asarray(m.reshape(K * LANES, w_out * c_out))


def _folded_fc1_weight(fc1_w):
    """Fold the PyTorch NCHW flatten order (row = c*H*W + h*W + w) plus the
    kernel's un-compacted pool2 lane layout (lane = 32*w + c per row h) into
    the fc1 weight, so no runtime activation permutation is needed."""
    wsrc = np.asarray(fc1_w, np.float32)                  # (256, 32), CHW-ordered rows
    m = np.zeros((H3, LANES, FC1_OUT), np.float32)
    for h in range(H3):
        for w in range(W3):
            for c in range(C2_OUT):
                m[h, 2 * C2_OUT * w + c, :] = wsrc[c * (H3 * W3) + h * W3 + w, :]
    return jnp.asarray(m.reshape(H3 * LANES, FC1_OUT))


def init_params(key):
    ks = jax.random.split(key, 8)

    def w(k, shape, scale=0.1):
        return scale * jax.random.normal(k, shape, jnp.float32)

    return {
        "conv1_w": w(ks[0], (K, K, C1_IN, C1_OUT)),    # HWIO
        "conv1_b": w(ks[1], (C1_OUT,)),
        "conv2_w": w(ks[2], (K, K, C2_IN, C2_OUT)),    # HWIO
        "conv2_b": w(ks[3], (C2_OUT,)),
        "fc1_w": w(ks[4], (FC1_IN, FC1_OUT)),          # rows in PyTorch CHW order
        "fc1_b": w(ks[5], (FC1_OUT,)),
        "fc2_w": w(ks[6], (FC1_OUT, FC2_OUT)),
        "fc2_b": w(ks[7], (FC2_OUT,)),
    }


def prepare_params(params):
    return {
        "w1b": _banded_conv_weight(params["conv1_w"], W1, C1_IN, C1_OUT,
                                   lane_stride=C1_IN),
        "b1l": jnp.tile(params["conv1_b"], W1).reshape(1, W1 * C1_OUT),
        "w2b": _banded_conv_weight(params["conv2_w"], W2, C2_IN, C2_OUT,
                                   lane_stride=2 * C2_IN),
        "b2l": jnp.tile(params["conv2_b"], W2).reshape(1, W2 * C2_OUT),
        "m1": _folded_fc1_weight(params["fc1_w"]),
        "fb1": params["fc1_b"].reshape(1, FC1_OUT),
        "m2": params["fc2_w"],
        "fb2": params["fc2_b"].reshape(1, FC2_OUT),
    }


# ----------------------------------------------------------------------------
# DNN forward pass: the PyTorch `for layer in layer_list: x = layer(x)` loop,
# collapsed into ONE fused Pallas kernel.
# ----------------------------------------------------------------------------
def dnn_forward(x_nchw, params):
    n = x_nchw.shape[0]
    # One tiny fused XLA reorg of the 4 KiB input: NCHW -> lane-dense
    # (N, H+2, 128) plane with the two vertical halo rows.  Horizontal SAME
    # padding is folded into the banded conv weight (never materialized).
    x = jnp.transpose(x_nchw, (0, 2, 3, 1))                 # NCHW -> NHWC
    x = x.reshape(n, H1, W1 * C1_IN).astype(jnp.float32)    # fold (W, C) into lanes
    x = jnp.pad(x, ((0, 0), (1, 1), (0, LANES - W1 * C1_IN)))
    return dnn_fused_call(x, params)                        # (N, 10)


def dnn_reference(x_nchw, p):
    """Pure-JAX reference (original PyTorch semantics) for correctness checks."""
    dn = ("NHWC", "HWIO", "NHWC")
    x = jnp.transpose(x_nchw, (0, 2, 3, 1))
    x = jax.lax.conv_general_dilated(x, p["conv1_w"], (1, 1), "SAME",
                                     dimension_numbers=dn) + p["conv1_b"]
    x = jnp.maximum(x, 0.0)
    x = jax.lax.reduce_window(x, -jnp.inf, jax.lax.max,
                              (1, 2, 2, 1), (1, 2, 2, 1), "VALID")
    x = jax.lax.conv_general_dilated(x, p["conv2_w"], (1, 1), "SAME",
                                     dimension_numbers=dn) + p["conv2_b"]
    x = jnp.maximum(x, 0.0)
    x = jax.lax.reduce_window(x, -jnp.inf, jax.lax.max,
                              (1, 2, 2, 1), (1, 2, 2, 1), "VALID")
    n = x.shape[0]
    x = jnp.transpose(x, (0, 3, 1, 2)).reshape(n, -1)       # NCHW flatten
    x = jnp.maximum(x @ p["fc1_w"] + p["fc1_b"], 0.0)
    x = x @ p["fc2_w"] + p["fc2_b"]
    return x


if __name__ == "__main__":
    key = jax.random.PRNGKey(0)
    kx, kp = jax.random.split(key)
    params = init_params(kp)
    prepped = prepare_params(params)
    x = jax.random.normal(kx, (2, 4, 16, 16), jnp.float32)  # NCHW, like PyTorch

    fwd = jax.jit(functools.partial(dnn_forward, params=prepped))
    out = jax.block_until_ready(fwd(x))

    ref = dnn_reference(x, params)
    assert out.shape == (2, 10) and out.dtype == jnp.float32
    max_err = float(jnp.max(jnp.abs(out - ref)))
    assert jnp.allclose(out, ref, rtol=1e-4, atol=1e-4), max_err

    print("KERNEL_OK")
</pallas_src>

<mosaic_0001>
module attributes {stable_mosaic.version = 11 : i64} {
  func.func @_dnn_kernel(%arg0: i32, %arg1: memref<2x18x128xf32, #tpu.memory_space<vmem>>, %arg2: memref<384x128xf32, #tpu.memory_space<vmem>>, %arg3: memref<1x128xf32, #tpu.memory_space<vmem>>, %arg4: memref<384x128xf32, #tpu.memory_space<vmem>>, %arg5: memref<1x128xf32, #tpu.memory_space<vmem>>, %arg6: memref<512x32xf32, #tpu.memory_space<vmem>>, %arg7: memref<1x32xf32, #tpu.memory_space<vmem>>, %arg8: memref<32x10xf32, #tpu.memory_space<vmem>>, %arg9: memref<1x10xf32, #tpu.memory_space<vmem>>, %arg10: memref<2x10xf32, #tpu.memory_space<vmem>>, %arg11: memref<32x128xf32, #tpu.memory_space<vmem>>, %arg12: memref<2x10x128xf32, #tpu.memory_space<vmem>>, %arg13: memref<16x128xf32, #tpu.memory_space<vmem>>, %arg14: memref<8x128xf32, #tpu.memory_space<vmem>>) attributes {dimension_semantics = [#tpu.dimension_semantics<parallel>], iteration_bounds = array<i64: 1>, scalar_prefetch = 0 : i64, scratch_operands = 4 : i64, tpu.core_type = #tpu.core_type<tc>, window_params = [{transform_indices = @transform_0, window_bounds = array<i64: 2, 18, 128>}, {pipeline_mode = #tpu.pipeline_mode<synchronous>, transform_indices = @transform_1, window_bounds = array<i64: 384, 128>}, {pipeline_mode = #tpu.pipeline_mode<synchronous>, transform_indices = @transform_2, window_bounds = array<i64: 1, 128>}, {pipeline_mode = #tpu.pipeline_mode<synchronous>, transform_indices = @transform_3, window_bounds = array<i64: 384, 128>}, {pipeline_mode = #tpu.pipeline_mode<synchronous>, transform_indices = @transform_4, window_bounds = array<i64: 1, 128>}, {pipeline_mode = #tpu.pipeline_mode<synchronous>, transform_indices = @transform_5, window_bounds = array<i64: 512, 32>}, {pipeline_mode = #tpu.pipeline_mode<synchronous>, transform_indices = @transform_6, window_bounds = array<i64: 1, 32>}, {pipeline_mode = #tpu.pipeline_mode<synchronous>, transform_indices = @transform_7, window_bounds = array<i64: 32, 10>}, {pipeline_mode = #tpu.pipeline_mode<synchronous>, transform_indices = @transform_8, window_bounds = array<i64: 1, 10>}, {transform_indices = @transform_9, window_bounds = array<i64: 2, 10>}]} {
    %c0 = arith.constant 0 : index
    %c0_0 = arith.constant 0 : index
    %c0_1 = arith.constant 0 : index
    %0 = vector.load %arg1[%c0, %c0_0, %c0_1] : memref<2x18x128xf32, #tpu.memory_space<vmem>>, vector<2x16x128xf32>
    %1 = vector.shape_cast %0 : vector<2x16x128xf32> to vector<32x128xf32>
    %c0_2 = arith.constant 0 : index
    %c1 = arith.constant 1 : index
    %c0_3 = arith.constant 0 : index
    %2 = vector.load %arg1[%c0_2, %c1, %c0_3] : memref<2x18x128xf32, #tpu.memory_space<vmem>>, vector<2x16x128xf32>
    %3 = vector.shape_cast %2 : vector<2x16x128xf32> to vector<32x128xf32>
    %c0_4 = arith.constant 0 : index
    %c2 = arith.constant 2 : index
    %c0_5 = arith.constant 0 : index
    %4 = vector.load %arg1[%c0_4, %c2, %c0_5] : memref<2x18x128xf32, #tpu.memory_space<vmem>>, vector<2x16x128xf32>
    %5 = vector.shape_cast %4 : vector<2x16x128xf32> to vector<32x128xf32>
    %6 = tpu.concatenate %1, %3, %5 in 1 : vector<32x128xf32>, vector<32x128xf32>, vector<32x128xf32> -> vector<32x384xf32>
    %c0_6 = arith.constant 0 : index
    %c0_7 = arith.constant 0 : index
    %7 = vector.load %arg2[%c0_6, %c0_7] : memref<384x128xf32, #tpu.memory_space<vmem>>, vector<384x128xf32>
    %cst = arith.constant dense<0.000000e+00> : vector<32x128xf32>
    %8 = tpu.matmul %6, %7, %cst {dimension_numbers = #tpu.dot_dimension_numbers<[1], [0], [0], [1], [0, 0, 1, 1], [], []>} : vector<32x384xf32>, vector<384x128xf32>, vector<32x128xf32> -> vector<32x128xf32>
    %c0_8 = arith.constant 0 : index
    %c0_9 = arith.constant 0 : index
    %9 = vector.load %arg3[%c0_8, %c0_9] : memref<1x128xf32, #tpu.memory_space<vmem>>, vector<1x128xf32>
    %10 = vector.broadcast %9 : vector<1x128xf32> to vector<32x128xf32>
    %11 = arith.addf %8, %10 : vector<32x128xf32>
    %cst_10 = arith.constant 0.000000e+00 : f32
    %12 = vector.broadcast %cst_10 : f32 to vector<32x128xf32>
    %13 = arith.maximumf %11, %12 : vector<32x128xf32>
    %c0_11 = arith.constant 0 : index
    %c0_12 = arith.constant 0 : index
    %14 = vector.load %arg11[%c0_11, %c0_12] : memref<32x128xf32, #tpu.memory_space<vmem>>, vector<32x128xf32>
    tpu.vector_store %arg11[%c0_11, %c0_12], %13 {strides = array<i32>} : memref<32x128xf32, #tpu.memory_space<vmem>>, vector<32x128xf32>,
    %c0_13 = arith.constant 0 : index
    %c0_14 = arith.constant 0 : index
    %15 = tpu.strided_load %arg11[%c0_13, %c0_14] {strides = array<i32: 2, 1>} : memref<32x128xf32, #tpu.memory_space<vmem>>, vector<16x128xf32>
    %c1_15 = arith.constant 1 : index
    %c0_16 = arith.constant 0 : index
    %16 = tpu.strided_load %arg11[%c1_15, %c0_16] {strides = array<i32: 2, 1>} : memref<32x128xf32, #tpu.memory_space<vmem>>, vector<16x128xf32>
    %17 = arith.maximumf %15, %16 : vector<16x128xf32>
    %c120_i32 = arith.constant 120 : i32
    %18 = tpu.dynamic_rotate %17 by %c120_i32 dim 1 : vector<16x128xf32>, i32 -> vector<16x128xf32>
    %19 = arith.maximumf %17, %18 : vector<16x128xf32>
    %cst_17 = arith.constant 0.000000e+00 : f32
    %20 = vector.broadcast %cst_17 : f32 to vector<2x1x128xf32>
    %c0_18 = arith.constant 0 : index
    %c0_19 = arith.constant 0 : index
    %c0_20 = arith.constant 0 : index
    %21 = vector.load %arg12[%c0_18, %c0_19, %c0_20] : memref<2x10x128xf32, #tpu.memory_space<vmem>>, vector<2x1x128xf32>
    tpu.vector_store %arg12[%c0_18, %c0_19, %c0_20], %20 {strides = array<i32>} : memref<2x10x128xf32, #tpu.memory_space<vmem>>, vector<2x1x128xf32>,
    %cst_21 = arith.constant 0.000000e+00 : f32
    %22 = vector.broadcast %cst_21 : f32 to vector<2x1x128xf32>
    %c0_22 = arith.constant 0 : index
    %c9 = arith.constant 9 : index
    %c0_23 = arith.constant 0 : index
    %23 = vector.load %arg12[%c0_22, %c9, %c0_23] : memref<2x10x128xf32, #tpu.memory_space<vmem>>, vector<2x1x128xf32>
    tpu.vector_store %arg12[%c0_22, %c9, %c0_23], %22 {strides = array<i32>} : memref<2x10x128xf32, #tpu.memory_space<vmem>>, vector<2x1x128xf32>,
    %24 = vector.shape_cast %19 : vector<16x128xf32> to vector<2x8x128xf32>
    %c0_24 = arith.constant 0 : index
    %c1_25 = arith.constant 1 : index
    %c0_26 = arith.constant 0 : index
    %25 = vector.load %arg12[%c0_24, %c1_25, %c0_26] : memref<2x10x128xf32, #tpu.memory_space<vmem>>, vector<2x8x128xf32>
    tpu.vector_store %arg12[%c0_24, %c1_25, %c0_26], %24 {strides = array<i32>} : memref<2x10x128xf32, #tpu.memory_space<vmem>>, vector<2x8x128xf32>,
    %c0_27 = arith.constant 0 : index
    %c0_28 = arith.constant 0 : index
    %c0_29 = arith.constant 0 : index
    %26 = vector.load %arg12[%c0_27, %c0_28, %c0_29] : memref<2x10x128xf32, #tpu.memory_space<vmem>>, vector<2x8x128xf32>
    %27 = vector.shape_cast %26 : vector<2x8x128xf32> to vector<16x128xf32>
    %c0_30 = arith.constant 0 : index
    %c1_31 = arith.constant 1 : index
    %c0_32 = arith.constant 0 : index
    %28 = vector.load %arg12[%c0_30, %c1_31, %c0_32] : memref<2x10x128xf32, #tpu.memory_space<vmem>>, vector<2x8x128xf32>
    %29 = vector.shape_cast %28 : vector<2x8x128xf32> to vector<16x128xf32>
    %c0_33 = arith.constant 0 : index
    %c2_34 = arith.constant 2 : index
    %c0_35 = arith.constant 0 : index
    %30 = vector.load %arg12[%c0_33, %c2_34, %c0_35] : memref<2x10x128xf32, #tpu.memory_space<vmem>>, vector<2x8x128xf32>
    %31 = vector.shape_cast %30 : vector<2x8x128xf32> to vector<16x128xf32>
    %32 = tpu.concatenate %27, %29, %31 in 1 : vector<16x128xf32>, vector<16x128xf32>, vector<16x128xf32> -> vector<16x384xf32>
    %c0_36 = arith.constant 0 : index
    %c0_37 = arith.constant 0 : index
    %33 = vector.load %arg4[%c0_36, %c0_37] : memref<384x128xf32, #tpu.memory_space<vmem>>, vector<384x128xf32>
    %cst_38 = arith.constant dense<0.000000e+00> : vector<16x128xf32>
    %34 = tpu.matmul %32, %33, %cst_38 {dimension_numbers = #tpu.dot_dimension_numbers<[1], [0], [0], [1], [0, 0, 1, 1], [], []>} : vector<16x384xf32>, vector<384x128xf32>, vector<16x128xf32> -> vector<16x128xf32>
    %c0_39 = arith.constant 0 : index
    %c0_40 = arith.constant 0 : index
    %35 = vector.load %arg5[%c0_39, %c0_40] : memref<1x128xf32, #tpu.memory_space<vmem>>, vector<1x128xf32>
    %36 = vector.broadcast %35 : vector<1x128xf32> to vector<16x128xf32>
    %37 = arith.addf %34, %36 : vector<16x128xf32>
    %cst_41 = arith.constant 0.000000e+00 : f32
    %38 = vector.broadcast %cst_41 : f32 to vector<16x128xf32>
    %39 = arith.maximumf %37, %38 : vector<16x128xf32>
    %c0_42 = arith.constant 0 : index
    %c0_43 = arith.constant 0 : index
    %40 = vector.load %arg13[%c0_42, %c0_43] : memref<16x128xf32, #tpu.memory_space<vmem>>, vector<16x128xf32>
    tpu.vector_store %arg13[%c0_42, %c0_43], %39 {strides = array<i32>} : memref<16x128xf32, #tpu.memory_space<vmem>>, vector<16x128xf32>,
    %c0_44 = arith.constant 0 : index
    %c0_45 = arith.constant 0 : index
    %41 = tpu.strided_load %arg13[%c0_44, %c0_45] {strides = array<i32: 2, 1>} : memref<16x128xf32, #tpu.memory_space<vmem>>, vector<8x128xf32>
    %c1_46 = arith.constant 1 : index
    %c0_47 = arith.constant 0 : index
    %42 = tpu.strided_load %arg13[%c1_46, %c0_47] {strides = array<i32: 2, 1>} : memref<16x128xf32, #tpu.memory_space<vmem>>, vector<8x128xf32>
    %43 = arith.maximumf %41, %42 : vector<8x128xf32>
    %c112_i32 = arith.constant 112 : i32
    %44 = tpu.dynamic_rotate %43 by %c112_i32 dim 1 : vector<8x128xf32>, i32 -> vector<8x128xf32>
    %45 = arith.maximumf %43, %44 : vector<8x128xf32>
    %c0_48 = arith.constant 0 : index
    %c0_49 = arith.constant 0 : index
    %46 = vector.load %arg14[%c0_48, %c0_49] : memref<8x128xf32, #tpu.memory_space<vmem>>, vector<8x128xf32>
    tpu.vector_store %arg14[%c0_48, %c0_49], %45 {strides = array<i32>} : memref<8x128xf32, #tpu.memory_space<vmem>>, vector<8x128xf32>,
    %c0_50 = arith.constant 0 : index
    %c0_51 = arith.constant 0 : index
    %47 = tpu.strided_load %arg14[%c0_50, %c0_51] {strides = array<i32: 4, 1>} : memref<8x128xf32, #tpu.memory_space<vmem>>, vector<2x128xf32>
    %c1_52 = arith.constant 1 : index
    %c0_53 = arith.constant 0 : index
    %48 = tpu.strided_load %arg14[%c1_52, %c0_53] {strides = array<i32: 4, 1>} : memref<8x128xf32, #tpu.memory_space<vmem>>, vector<2x128xf32>
    %c2_54 = arith.constant 2 : index
    %c0_55 = arith.constant 0 : index
    %49 = tpu.strided_load %arg14[%c2_54, %c0_55] {strides = array<i32: 4, 1>} : memref<8x128xf32, #tpu.memory_space<vmem>>, vector<2x128xf32>
    %c3 = arith.constant 3 : index
    %c0_56 = arith.constant 0 : index
    %50 = tpu.strided_load %arg14[%c3, %c0_56] {strides = array<i32: 4, 1>} : memref<8x128xf32, #tpu.memory_space<vmem>>, vector<2x128xf32>
    %51 = tpu.concatenate %47, %48, %49, %50 in 1 : vector<2x128xf32>, vector<2x128xf32>, vector<2x128xf32>, vector<2x128xf32> -> vector<2x512xf32>
    %c0_57 = arith.constant 0 : index
    %c0_58 = arith.constant 0 : index
    %52 = vector.load %arg6[%c0_57, %c0_58] : memref<512x32xf32, #tpu.memory_space<vmem>>, vector<512x32xf32>
    %cst_59 = arith.constant dense<0.000000e+00> : vector<2x32xf32>
    %53 = tpu.matmul %51, %52, %cst_59 {dimension_numbers = #tpu.dot_dimension_numbers<[1], [0], [0], [1], [0, 0, 1, 1], [], []>} : vector<2x512xf32>, vector<512x32xf32>, vector<2x32xf32> -> vector<2x32xf32>
    %c0_60 = arith.constant 0 : index
    %c0_61 = arith.constant 0 : index
    %54 = vector.load %arg7[%c0_60, %c0_61] : memref<1x32xf32, #tpu.memory_space<vmem>>, vector<1x32xf32>
    %55 = vector.broadcast %54 : vector<1x32xf32> to vector<2x32xf32>
    %56 = arith.addf %53, %55 : vector<2x32xf32>
    %cst_62 = arith.constant 0.000000e+00 : f32
    %57 = vector.broadcast %cst_62 : f32 to vector<2x32xf32>
    %58 = arith.maximumf %56, %57 : vector<2x32xf32>
    %c0_63 = arith.constant 0 : index
    %c0_64 = arith.constant 0 : index
    %59 = vector.load %arg8[%c0_63, %c0_64] : memref<32x10xf32, #tpu.memory_space<vmem>>, vector<32x10xf32>
    %cst_65 = arith.constant dense<0.000000e+00> : vector<2x10xf32>
    %60 = tpu.matmul %58, %59, %cst_65 {dimension_numbers = #tpu.dot_dimension_numbers<[1], [0], [0], [1], [0, 0, 1, 1], [], []>} : vector<2x32xf32>, vector<32x10xf32>, vector<2x10xf32> -> vector<2x10xf32>
    %c0_66 = arith.constant 0 : index
    %c0_67 = arith.constant 0 : index
    %61 = vector.load %arg9[%c0_66, %c0_67] : memref<1x10xf32, #tpu.memory_space<vmem>>, vector<1x10xf32>
    %62 = vector.broadcast %61 : vector<1x10xf32> to vector<2x10xf32>
    %63 = arith.addf %60, %62 : vector<2x10xf32>
    %c0_68 = arith.constant 0 : index
    %c0_69 = arith.constant 0 : index
    %64 = vector.load %arg10[%c0_68, %c0_69] : memref<2x10xf32, #tpu.memory_space<vmem>>, vector<2x10xf32>
    tpu.vector_store %arg10[%c0_68, %c0_69], %63 {strides = array<i32>} : memref<2x10xf32, #tpu.memory_space<vmem>>, vector<2x10xf32>,
    return
  }
  func.func @transform_0(%arg0: i32) -> (i32, i32, i32) {
    %c0_i32 = arith.constant 0 : i32
    %c0_i32_0 = arith.constant 0 : i32
    %c0_i32_1 = arith.constant 0 : i32
    return %arg0, %c0_i32, %c0_i32_0 : i32, i32, i32
  }
  func.func @transform_1(%arg0: i32) -> (i32, i32) {
    %c0_i32 = arith.constant 0 : i32
    %c0_i32_0 = arith.constant 0 : i32
    %c0_i32_1 = arith.constant 0 : i32
    return %c0_i32, %c0_i32_0 : i32, i32
  }
  func.func @transform_2(%arg0: i32) -> (i32, i32) {
    %c0_i32 = arith.constant 0 : i32
    %c0_i32_0 = arith.constant 0 : i32
    %c0_i32_1 = arith.constant 0 : i32
    return %c0_i32, %c0_i32_0 : i32, i32
  }
  func.func @transform_3(%arg0: i32) -> (i32, i32) {
    %c0_i32 = arith.constant 0 : i32
    %c0_i32_0 = arith.constant 0 : i32
    %c0_i32_1 = arith.constant 0 : i32
    return %c0_i32, %c0_i32_0 : i32, i32
  }
  func.func @transform_4(%arg0: i32) -> (i32, i32) {
    %c0_i32 = arith.constant 0 : i32
    %c0_i32_0 = arith.constant 0 : i32
    %c0_i32_1 = arith.constant 0 : i32
    return %c0_i32, %c0_i32_0 : i32, i32
  }
  func.func @transform_5(%arg0: i32) -> (i32, i32) {
    %c0_i32 = arith.constant 0 : i32
    %c0_i32_0 = arith.constant 0 : i32
    %c0_i32_1 = arith.constant 0 : i32
    return %c0_i32, %c0_i32_0 : i32, i32
  }
  func.func @transform_6(%arg0: i32) -> (i32, i32) {
    %c0_i32 = arith.constant 0 : i32
    %c0_i32_0 = arith.constant 0 : i32
    %c0_i32_1 = arith.constant 0 : i32
    return %c0_i32, %c0_i32_0 : i32, i32
  }
  func.func @transform_7(%arg0: i32) -> (i32, i32) {
    %c0_i32 = arith.constant 0 : i32
    %c0_i32_0 = arith.constant 0 : i32
    %c0_i32_1 = arith.constant 0 : i32
    return %c0_i32, %c0_i32_0 : i32, i32
  }
  func.func @transform_8(%arg0: i32) -> (i32, i32) {
    %c0_i32 = arith.constant 0 : i32
    %c0_i32_0 = arith.constant 0 : i32
    %c0_i32_1 = arith.constant 0 : i32
    return %c0_i32, %c0_i32_0 : i32, i32
  }
  func.func @transform_9(%arg0: i32) -> (i32, i32) {
    %c0_i32 = arith.constant 0 : i32
    %c0_i32_0 = arith.constant 0 : i32
    return %arg0, %c0_i32 : i32, i32
  }
}

</mosaic_0001>

<llo_original>
// kernel: dnn_forward.1
$region0: #{dnn_forward.1}
  #allocation0 [shape = 'u32[]', space=smem, size = 0x4, offset = 0x4, fixed_abs, tag = 'smem constant byte address 0x4 - core index']
  #allocation1 [shape = 'u32[72,128]{1,0:T(1,128)}', space=vmem, size = 0x9000, scoped, tag = 'internal scratch']
  #allocation2 [shape = 'f32[32,128]{1,0:T(8,128)}', space=vmem, size = 0x4000, scoped, tag = 'scratch operand']
  #allocation3 [shape = 'f32[2,10,128]{2,1,0:T(8,128)}', space=vmem, size = 0x4000, scoped, tag = 'scratch operand']
  #allocation4 [shape = 'f32[16,128]{1,0:T(8,128)}', space=vmem, size = 0x2000, scoped, tag = 'scratch operand']
  #allocation5 [shape = 'f32[8,128]{1,0:T(8,128)}', space=vmem, size = 0x1000, scoped, tag = 'scratch operand']
  %s0 = inlined_call_operand.vmem [shape: f32[2,18,128], index: 0, kind: input, shape index: {}]
  %s1 = inlined_call_operand.hbm [shape: f32[384,128], index: 1, kind: input, shape index: {}]
  %s2 = inlined_call_operand.vmem [shape: f32[1,128], index: 2, kind: input, shape index: {}]
  %s3 = inlined_call_operand.vmem [shape: f32[384,128], index: 3, kind: input, shape index: {}]
  %s4 = inlined_call_operand.vmem [shape: f32[1,128], index: 4, kind: input, shape index: {}]
  %s5 = inlined_call_operand.hbm [shape: f32[512,32], index: 5, kind: input, shape index: {}]
  %s6 = inlined_call_operand.vmem [shape: f32[1,32], index: 6, kind: input, shape index: {}]
  %s7 = inlined_call_operand.vmem [shape: f32[32,10], index: 7, kind: input, shape index: {}]
  %s8 = inlined_call_operand.vmem [shape: f32[1,10], index: 8, kind: input, shape index: {}]
  %s9 = inlined_call_operand.hbm [shape: f32[2,10], index: 9, kind: output, shape index: {}]
  %s10 = sld [smem:[#allocation0]]
  $region54: #{dnn_forward.1} parent=0
    _
  %s12 = ssub.s32 1, %s10
  %s13 = scalar_select 0, %s12, %s10
  $region1: #{dnn_forward.1} parent=0
    #allocation6 [shape = 'u8[196608]{0}', space=vmem, size = 0x30000, scoped, tag = 'input window, operand 1, single buffered']
    #allocation7 [shape = 's32[1]{0}', space=sflag, size = 0x4, scoped, tag = 'scoped memory for dnn_forward.1']
    #allocation8 [shape = 's32[1]{0}', space=sflag, size = 0x4, scoped, tag = 'scoped memory for dnn_forward.1']
    #allocation9 [shape = 'u8[262144]{0}', space=vmem, size = 0x40000, scoped, tag = 'input window, operand 5, single buffered']
    #allocation10 [shape = 's32[1]{0}', space=sflag, size = 0x4, scoped, tag = 'scoped memory for dnn_forward.1']
    #allocation11 [shape = 'u8[1024]{0}', space=vmem, size = 0x400, scoped, tag = 'output window, operand 0, single buffered']
    %14 = vsyncpa [#allocation7], 0
    %15 = vsyncpa [#allocation10], 0
    %16 = vsyncpa [#allocation8], 0
    // Predicated region
    $region2: #{dnn_forward.1} parent=1 // pred_check
      _
    $region3: #{dnn_forward.1} parent=1 // pred_check_branch
      %18 = sbr.rel (0) target = $region5
    $region4: #{dnn_forward.1} parent=1 // pred_region
      _
    $region5: #{dnn_forward.1} parent=1 // pred_fallthru
      _
    // Predicated region
    $region6: #{dnn_forward.1} parent=1 // pred_check
      _
    $region7: #{dnn_forward.1} parent=1 // pred_check_branch
      %20 = sbr.rel (0) target = $region9
    $region8: #{dnn_forward.1} parent=1 // pred_region
      %22 = vsyncadd [#allocation7], 0
      %s23 = sshll.u32 %s1, 4
      %s24 = int_to_ptr.hbm [resolvable:$true] %s23
      %s25 = sshll.u32 [#allocation6], 4
      %s26 = int_to_ptr.vmem [resolvable:$true] %s25
      %31 = dma.hbm_to_vmem [thread:$0]  %s24, 6144, %s26, [#allocation7], 128, 128, 8
    $region9: #{dnn_forward.1} parent=1 // pred_fallthru
      _
    // Predicated region
    $region10: #{dnn_forward.1} parent=1 // pred_check
      _
    $region11: #{dnn_forward.1} parent=1 // pred_check_branch
      %33 = sbr.rel (0) target = $region13
    $region12: #{dnn_forward.1} parent=1 // pred_region
      _
    $region13: #{dnn_forward.1} parent=1 // pred_fallthru
      _
    // Predicated region
    $region14: #{dnn_forward.1} parent=1 // pred_check
      _
    $region15: #{dnn_forward.1} parent=1 // pred_check_branch
      %35 = sbr.rel (0) target = $region17
    $region16: #{dnn_forward.1} parent=1 // pred_region
      _
    $region17: #{dnn_forward.1} parent=1 // pred_fallthru
      _
    // Predicated region
    $region18: #{dnn_forward.1} parent=1 // pred_check
      _
    $region19: #{dnn_forward.1} parent=1 // pred_check_branch
      %37 = sbr.rel (0) target = $region21
    $region20: #{dnn_forward.1} parent=1 // pred_region
      _
    $region21: #{dnn_forward.1} parent=1 // pred_fallthru
      _
    // Predicated region
    $region22: #{dnn_forward.1} parent=1 // pred_check
      _
    $region23: #{dnn_forward.1} parent=1 // pred_check_branch
      %39 = sbr.rel (0) target = $region25
    $region24: #{dnn_forward.1} parent=1 // pred_region
      %41 = vsyncadd [#allocation10], 0
      %s42 = sshll.u32 %s5, 4
      %s43 = int_to_ptr.hbm [resolvable:$true] %s42
      %s44 = sshll.u32 [#allocation9], 4
      %s45 = int_to_ptr.vmem [resolvable:$true] %s44
      %50 = dma.hbm_to_vmem [thread:$0]  %s43, 8192, %s45, [#allocation10], 128, 128, 8
    $region25: #{dnn_forward.1} parent=1 // pred_fallthru
      _
    // Predicated region
    $region26: #{dnn_forward.1} parent=1 // pred_check
      _
    $region27: #{dnn_forward.1} parent=1 // pred_check_branch
      %52 = sbr.rel (0) target = $region29
    $region28: #{dnn_forward.1} parent=1 // pred_region
      _
    $region29: #{dnn_forward.1} parent=1 // pred_fallthru
      _
    // Predicated region
    $region30: #{dnn_forward.1} parent=1 // pred_check
      _
    $region31: #{dnn_forward.1} parent=1 // pred_check_branch
      %54 = sbr.rel (0) target = $region33
    $region32: #{dnn_forward.1} parent=1 // pred_region
      _
    $region33: #{dnn_forward.1} parent=1 // pred_fallthru
      _
    // Predicated region
    $region34: #{dnn_forward.1} parent=1 // pred_check
      _
    $region35: #{dnn_forward.1} parent=1 // pred_check_branch
      %56 = sbr.rel (0) target = $region37
    $region36: #{dnn_forward.1} parent=1 // pred_region
      _
    $region37: #{dnn_forward.1} parent=1 // pred_fallthru
      _
    // Predicated region
    $region38: #{dnn_forward.1} parent=1 // pred_check
      _
    $region39: #{dnn_forward.1} parent=1 // pred_check_branch
      %58 = sbr.rel (0) target = $region41
    $region40: #{dnn_forward.1} parent=1 // pred_region
      %60 = dma.done [#allocation7], 6144
    $region41: #{dnn_forward.1} parent=1 // pred_fallthru
      _
    // Predicated region
    $region42: #{dnn_forward.1} parent=1 // pred_check
      _
    $region43: #{dnn_forward.1} parent=1 // pred_check_branch
      %62 = sbr.rel (0) target = $region45
    $region44: #{dnn_forward.1} parent=1 // pred_region
      %64 = dma.done [#allocation10], 8192
    $region45: #{dnn_forward.1} parent=1 // pred_fallthru
      _
    %v65 = vld [vmem:[%s0] sm:$0xff]
    %v66 = vld [vmem:[%s0 + $0x8] sm:$0xff]
    %v67 = vld [vmem:[%s0 + $0x18] sm:$0xff]
    %v68 = vld [vmem:[%s0 + $0x20] sm:$0xff]
    %v69 = vld [vmem:[%s0 + $0x1] sm:$0xff]
    %v70 = vld [vmem:[%s0 + $0x9] sm:$0xff]
    %v71 = vld [vmem:[%s0 + $0x19] sm:$0xff]
    %v72 = vld [vmem:[%s0 + $0x21] sm:$0xff]
    %v73 = vld [vmem:[%s0 + $0x2] sm:$0xff]
    %v74 = vld [vmem:[%s0 + $0xa] sm:$0xff]
    %v75 = vld [vmem:[%s0 + $0x1a] sm:$0xff]
    %v76 = vld [vmem:[%s0 + $0x22] sm:$0xff]
    %v77 = vld [vmem:[#allocation6] sm:$0xff]
    %v78 = vld [vmem:[#allocation6 + $0x8] sm:$0xff]
    %v79 = vld [vmem:[#allocation6 + $0x10] sm:$0xff]
    %v80 = vld [vmem:[#allocation6 + $0x18] sm:$0xff]
    %v81 = vld [vmem:[#allocation6 + $0x20] sm:$0xff]
    %v82 = vld [vmem:[#allocation6 + $0x28] sm:$0xff]
    %v83 = vld [vmem:[#allocation6 + $0x30] sm:$0xff]
    %v84 = vld [vmem:[#allocation6 + $0x38] sm:$0xff]
    %v85 = vld [vmem:[#allocation6 + $0x40] sm:$0xff]
    %v86 = vld [vmem:[#allocation6 + $0x48] sm:$0xff]
    %v87 = vld [vmem:[#allocation6 + $0x50] sm:$0xff]
    %v88 = vld [vmem:[#allocation6 + $0x58] sm:$0xff]
    %v89 = vld [vmem:[#allocation6 + $0x60] sm:$0xff]
    %v90 = vld [vmem:[#allocation6 + $0x68] sm:$0xff]
    %v91 = vld [vmem:[#allocation6 + $0x70] sm:$0xff]
    %v92 = vld [vmem:[#allocation6 + $0x78] sm:$0xff]
    %v93 = vld [vmem:[#allocation6 + $0x80] sm:$0xff]
    %v94 = vld [vmem:[#allocation6 + $0x88] sm:$0xff]
    %v95 = vld [vmem:[#allocation6 + $0x90] sm:$0xff]
    %v96 = vld [vmem:[#allocation6 + $0x98] sm:$0xff]
    %v97 = vld [vmem:[#allocation6 + $0xa0] sm:$0xff]
    %v98 = vld [vmem:[#allocation6 + $0xa8] sm:$0xff]
    %v99 = vld [vmem:[#allocation6 + $0xb0] sm:$0xff]
    %v100 = vld [vmem:[#allocation6 + $0xb8] sm:$0xff]
    %v101 = vld [vmem:[#allocation6 + $0xc0] sm:$0xff]
    %v102 = vld [vmem:[#allocation6 + $0xc8] sm:$0xff]
    %v103 = vld [vmem:[#allocation6 + $0xd0] sm:$0xff]
    %v104 = vld [vmem:[#allocation6 + $0xd8] sm:$0xff]
    %v105 = vld [vmem:[#allocation6 + $0xe0] sm:$0xff]
    %v106 = vld [vmem:[#allocation6 + $0xe8] sm:$0xff]
    %v107 = vld [vmem:[#allocation6 + $0xf0] sm:$0xff]
    %v108 = vld [vmem:[#allocation6 + $0xf8] sm:$0xff]
    %v109 = vld [vmem:[#allocation6 + $0x100] sm:$0xff]
    %v110 = vld [vmem:[#allocation6 + $0x108] sm:$0xff]
    %v111 = vld [vmem:[#allocation6 + $0x110] sm:$0xff]
    %v112 = vld [vmem:[#allocation6 + $0x118] sm:$0xff]
    %v113 = vld [vmem:[#allocation6 + $0x120] sm:$0xff]
    %v114 = vld [vmem:[#allocation6 + $0x128] sm:$0xff]
    %v115 = vld [vmem:[#allocation6 + $0x130] sm:$0xff]
    %v116 = vld [vmem:[#allocation6 + $0x138] sm:$0xff]
    %v117 = vld [vmem:[#allocation6 + $0x140] sm:$0xff]
    %v118 = vld [vmem:[#allocation6 + $0x148] sm:$0xff]
    %v119 = vld [vmem:[#allocation6 + $0x150] sm:$0xff]
    %v120 = vld [vmem:[#allocation6 + $0x158] sm:$0xff]
    %v121 = vld [vmem:[#allocation6 + $0x160] sm:$0xff]
    %v122 = vld [vmem:[#allocation6 + $0x168] sm:$0xff]
    %v123 = vld [vmem:[#allocation6 + $0x170] sm:$0xff]
    %v124 = vld [vmem:[#allocation6 + $0x178] sm:$0xff]
    %v125 = vld [vmem:[%s2] sm:$0x1]
    %v127 = vperm.slane %v125, 0
    %129 = vmatpush.msra.mxu0 %v92
    %130 = vmatpush.msra.mxu0 %v91
    %131 = vmatpush.msra.mxu0 %v90
    %132 = vmatpush.msra.mxu0 %v89
    %133 = vmatpush.msra.mxu0 %v88
    %134 = vmatpush.msra.mxu0 %v87
    %135 = vmatpush.msra.mxu0 %v86
    %136 = vmatpush.msra.mxu0 %v85
    %137 = vmatpush.msra.mxu0 %v84
    %138 = vmatpush.msra.mxu0 %v83
    %139 = vmatpush.msra.mxu0 %v82
    %140 = vmatpush.msra.mxu0 %v81
    %141 = vmatpush.msra.mxu0 %v80
    %142 = vmatpush.msra.mxu0 %v79
    %143 = vmatpush.msra.mxu0 %v78
    %144 = vmatpush.msra.mxu0 %v77
    %145 = vmatmul.f32.gmra.mxu0 %v65
    %v146 = vpop.f32.mrf.mxu0
    %v147 = vadd.f32 %v127, %v146
    %148 = vmatmul.f32.gmra.mxu0 %v66
    %v149 = vpop.f32.mrf.mxu0
    %v150 = vadd.f32 %v127, %v149
    %151 = vmatmul.f32.gmra.mxu0 %v67
    %v152 = vpop.f32.mrf.mxu0
    %v153 = vadd.f32 %v127, %v152
    %154 = vmatmul.f32.gmra.mxu0 %v68
    %v155 = vpop.f32.mrf.mxu0
    %v156 = vadd.f32 %v127, %v155
    %157 = vdwg.mxu0
    %158 = vmatpush.msra.mxu0 %v108
    %159 = vmatpush.msra.mxu0 %v107
    %160 = vmatpush.msra.mxu0 %v106
    %161 = vmatpush.msra.mxu0 %v105
    %162 = vmatpush.msra.mxu0 %v104
    %163 = vmatpush.msra.mxu0 %v103
    %164 = vmatpush.msra.mxu0 %v102
    %165 = vmatpush.msra.mxu0 %v101
    %166 = vmatpush.msra.mxu0 %v100
    %167 = vmatpush.msra.mxu0 %v99
    %168 = vmatpush.msra.mxu0 %v98
    %169 = vmatpush.msra.mxu0 %v97
    %170 = vmatpush.msra.mxu0 %v96
    %171 = vmatpush.msra.mxu0 %v95
    %172 = vmatpush.msra.mxu0 %v94
    %173 = vmatpush.msra.mxu0 %v93
    %174 = vmatmul.f32.gmra.mxu0 %v69
    %v175 = vpop.f32.mrf.mxu0
    %v176 = vadd.f32 %v147, %v175
    %177 = vmatmul.f32.gmra.mxu0 %v70
    %v178 = vpop.f32.mrf.mxu0
    %v179 = vadd.f32 %v150, %v178
    %180 = vmatmul.f32.gmra.mxu0 %v71
    %v181 = vpop.f32.mrf.mxu0
    %v182 = vadd.f32 %v153, %v181
    %183 = vmatmul.f32.gmra.mxu0 %v72
    %v184 = vpop.f32.mrf.mxu0
    %v185 = vadd.f32 %v156, %v184
    %186 = vdwg.mxu0
    %187 = vmatpush.msra.mxu0 %v124
    %188 = vmatpush.msra.mxu0 %v123
    %189 = vmatpush.msra.mxu0 %v122
    %190 = vmatpush.msra.mxu0 %v121
    %191 = vmatpush.msra.mxu0 %v120
    %192 = vmatpush.msra.mxu0 %v119
    %193 = vmatpush.msra.mxu0 %v118
    %194 = vmatpush.msra.mxu0 %v117
    %195 = vmatpush.msra.mxu0 %v116
    %196 = vmatpush.msra.mxu0 %v115
    %197 = vmatpush.msra.mxu0 %v114
    %198 = vmatpush.msra.mxu0 %v113
    %199 = vmatpush.msra.mxu0 %v112
    %200 = vmatpush.msra.mxu0 %v111
    %201 = vmatpush.msra.mxu0 %v110
    %202 = vmatpush.msra.mxu0 %v109
    %203 = vmatmul.f32.gmra.mxu0 %v73
    %v204 = vpop.f32.mrf.mxu0
    %v205 = vadd.f32 %v176, %v204
    %206 = vmatmul.f32.gmra.mxu0 %v74
    %v207 = vpop.f32.mrf.mxu0
    %v208 = vadd.f32 %v179, %v207
    %209 = vmatmul.f32.gmra.mxu0 %v75
    %v210 = vpop.f32.mrf.mxu0
    %v211 = vadd.f32 %v182, %v210
    %212 = vmatmul.f32.gmra.mxu0 %v76
    %v213 = vpop.f32.mrf.mxu0
    %v214 = vadd.f32 %v185, %v213
    %215 = vdwg.mxu0
    %v216 = vmax.f32 %v205, 0.0
    %v217 = vmax.f32 %v208, 0.0
    %v218 = vmax.f32 %v211, 0.0
    %v219 = vmax.f32 %v214, 0.0
    %220 = vst [vmem:[#allocation2] sm:$0xff] %v216
    %221 = vst [vmem:[#allocation2 + $0x8] sm:$0xff] %v217
    %222 = vst [vmem:[#allocation2 + $0x10] sm:$0xff] %v218
    %223 = vst [vmem:[#allocation2 + $0x18] sm:$0xff] %v219
    %v224 = vld [vmem:[#allocation2] ss:$2 sm:$0xff]
    %s225 = scalar_lea.vmem [#allocation2], 16
    %v226 = vld [vmem:[%s225] ss:$2 sm:$0xff]
    %s227 = scalar_lea.vmem [#allocation2], 1
    %v228 = vld [vmem:[%s227] ss:$2 sm:$0xff]
    %s229 = scalar_lea.vmem [#allocation2], 17
    %v230 = vld [vmem:[%s229] ss:$2 sm:$0xff]
    %v231 = vmax.f32 %v224, %v228
    %v232 = vmax.f32 %v226, %v230
    %233 = vrot.lane.b32.xlu0 %v231, 120
    %v234 = vpop.permute.xlu0 %233
    %235 = vrot.lane.b32.xlu0 %v232, 120
    %v236 = vpop.permute.xlu0 %235
    %v237 = vmax.f32 %v231, %v234
    %v238 = vmax.f32 %v232, %v236
    %239 = vst [vmem:[#allocation3] sm:$0x1] 0.0
    %240 = vst [vmem:[#allocation3 + $0x10] sm:$0x1] 0.0
    %241 = vst [vmem:[#allocation3 + $0x9] sm:$0x1] 0.0
    %242 = vst [vmem:[#allocation3 + $0x19] sm:$0x1] 0.0
    %243 = vst [vmem:[#allocation3 + $0x1] sm:$0xff] %v237
    %244 = vst [vmem:[#allocation3 + $0x11] sm:$0xff] %v238
    %v245 = vld [vmem:[#allocation3] sm:$0xff]
    %v246 = vld [vmem:[#allocation3 + $0x10] sm:$0xff]
    %v247 = vld [vmem:[#allocation3 + $0x1] sm:$0xff]
    %v248 = vld [vmem:[#allocation3 + $0x11] sm:$0xff]
    %v249 = vld [vmem:[#allocation3 + $0x2] sm:$0xff]
    %v250 = vld [vmem:[#allocation3 + $0x12] sm:$0xff]
    %v251 = vld [vmem:[%s3] sm:$0xff]
    %v252 = vld [vmem:[%s3 + $0x8] sm:$0xff]
    %v253 = vld [vmem:[%s3 + $0x10] sm:$0xff]
    %v254 = vld [vmem:[%s3 + $0x18] sm:$0xff]
    %v255 = vld [vmem:[%s3 + $0x20] sm:$0xff]
    %v256 = vld [vmem:[%s3 + $0x28] sm:$0xff]
    %v257 = vld [vmem:[%s3 + $0x30] sm:$0xff]
    %v258 = vld [vmem:[%s3 + $0x38] sm:$0xff]
    %v259 = vld [vmem:[%s3 + $0x40] sm:$0xff]
    %v260 = vld [vmem:[%s3 + $0x48] sm:$0xff]
    %v261 = vld [vmem:[%s3 + $0x50] sm:$0xff]
    %v262 = vld [vmem:[%s3 + $0x58] sm:$0xff]
    %v263 = vld [vmem:[%s3 + $0x60] sm:$0xff]
    %v264 = vld [vmem:[%s3 + $0x68] sm:$0xff]
    %v265 = vld [vmem:[%s3 + $0x70] sm:$0xff]
    %v266 = vld [vmem:[%s3 + $0x78] sm:$0xff]
    %v267 = vld [vmem:[%s3 + $0x80] sm:$0xff]
    %v268 = vld [vmem:[%s3 + $0x88] sm:$0xff]
    %v269 = vld [vmem:[%s3 + $0x90] sm:$0xff]
    %v270 = vld [vmem:[%s3 + $0x98] sm:$0xff]
    %v271 = vld [vmem:[%s3 + $0xa0] sm:$0xff]
    %v272 = vld [vmem:[%s3 + $0xa8] sm:$0xff]
    %v273 = vld [vmem:[%s3 + $0xb0] sm:$0xff]
    %v274 = vld [vmem:[%s3 + $0xb8] sm:$0xff]
    %v275 = vld [vmem:[%s3 + $0xc0] sm:$0xff]
    %v276 = vld [vmem:[%s3 + $0xc8] sm:$0xff]
    %v277 = vld [vmem:[%s3 + $0xd0] sm:$0xff]
    %v278 = vld [vmem:[%s3 + $0xd8] sm:$0xff]
    %v279 = vld [vmem:[%s3 + $0xe0] sm:$0xff]
    %v280 = vld [vmem:[%s3 + $0xe8] sm:$0xff]
    %v281 = vld [vmem:[%s3 + $0xf0] sm:$0xff]
    %v282 = vld [vmem:[%s3 + $0xf8] sm:$0xff]
    %v283 = vld [vmem:[%s3 + $0x100] sm:$0xff]
    %v284 = vld [vmem:[%s3 + $0x108] sm:$0xff]
    %v285 = vld [vmem:[%s3 + $0x110] sm:$0xff]
    %v286 = vld [vmem:[%s3 + $0x118] sm:$0xff]
    %v287 = vld [vmem:[%s3 + $0x120] sm:$0xff]
    %v288 = vld [vmem:[%s3 + $0x128] sm:$0xff]
    %v289 = vld [vmem:[%s3 + $0x130] sm:$0xff]
    %v290 = vld [vmem:[%s3 + $0x138] sm:$0xff]
    %v291 = vld [vmem:[%s3 + $0x140] sm:$0xff]
    %v292 = vld [vmem:[%s3 + $0x148] sm:$0xff]
    %v293 = vld [vmem:[%s3 + $0x150] sm:$0xff]
    %v294 = vld [vmem:[%s3 + $0x158] sm:$0xff]
    %v295 = vld [vmem:[%s3 + $0x160] sm:$0xff]
    %v296 = vld [vmem:[%s3 + $0x168] sm:$0xff]
    %v297 = vld [vmem:[%s3 + $0x170] sm:$0xff]
    %v298 = vld [vmem:[%s3 + $0x178] sm:$0xff]
    %v299 = vld [vmem:[%s4] sm:$0x1]
    %v301 = vperm.slane %v299, 0
    %303 = vmatpush.msra.mxu0 %v266
    %304 = vmatpush.msra.mxu0 %v265
    %305 = vmatpush.msra.mxu0 %v264
    %306 = vmatpush.msra.mxu0 %v263
    %307 = vmatpush.msra.mxu0 %v262
    %308 = vmatpush.msra.mxu0 %v261
    %309 = vmatpush.msra.mxu0 %v260
    %310 = vmatpush.msra.mxu0 %v259
    %311 = vmatpush.msra.mxu0 %v258
    %312 = vmatpush.msra.mxu0 %v257
    %313 = vmatpush.msra.mxu0 %v256
    %314 = vmatpush.msra.mxu0 %v255
    %315 = vmatpush.msra.mxu0 %v254
    %316 = vmatpush.msra.mxu0 %v253
    %317 = vmatpush.msra.mxu0 %v252
    %318 = vmatpush.msra.mxu0 %v251
    %319 = vmatmul.f32.gmra.mxu0 %v245
    %v320 = vpop.f32.mrf.mxu0
    %v321 = vadd.f32 %v301, %v320
    %322 = vmatmul.f32.gmra.mxu0 %v246
    %v323 = vpop.f32.mrf.mxu0
    %v324 = vadd.f32 %v301, %v323
    %325 = vdwg.mxu0
    %326 = vmatpush.msra.mxu0 %v282
    %327 = vmatpush.msra.mxu0 %v281
    %328 = vmatpush.msra.mxu0 %v280
    %329 = vmatpush.msra.mxu0 %v279
    %330 = vmatpush.msra.mxu0 %v278
    %331 = vmatpush.msra.mxu0 %v277
    %332 = vmatpush.msra.mxu0 %v276
    %333 = vmatpush.msra.mxu0 %v275
    %334 = vmatpush.msra.mxu0 %v274
    %335 = vmatpush.msra.mxu0 %v273
    %336 = vmatpush.msra.mxu0 %v272
    %337 = vmatpush.msra.mxu0 %v271
    %338 = vmatpush.msra.mxu0 %v270
    %339 = vmatpush.msra.mxu0 %v269
    %340 = vmatpush.msra.mxu0 %v268
    %341 = vmatpush.msra.mxu0 %v267
    %342 = vmatmul.f32.gmra.mxu0 %v247
    %v343 = vpop.f32.mrf.mxu0
    %v344 = vadd.f32 %v321, %v343
    %345 = vmatmul.f32.gmra.mxu0 %v248
    %v346 = vpop.f32.mrf.mxu0
    %v347 = vadd.f32 %v324, %v346
    %348 = vdwg.mxu0
    %349 = vmatpush.msra.mxu0 %v298
    %350 = vmatpush.msra.mxu0 %v297
    %351 = vmatpush.msra.mxu0 %v296
    %352 = vmatpush.msra.mxu0 %v295
    %353 = vmatpush.msra.mxu0 %v294
    %354 = vmatpush.msra.mxu0 %v293
    %355 = vmatpush.msra.mxu0 %v292
    %356 = vmatpush.msra.mxu0 %v291
    %357 = vmatpush.msra.mxu0 %v290
    %358 = vmatpush.msra.mxu0 %v289
    %359 = vmatpush.msra.mxu0 %v288
    %360 = vmatpush.msra.mxu0 %v287
    %361 = vmatpush.msra.mxu0 %v286
    %362 = vmatpush.msra.mxu0 %v285
    %363 = vmatpush.msra.mxu0 %v284
    %364 = vmatpush.msra.mxu0 %v283
    %365 = vmatmul.f32.gmra.mxu0 %v249
    %v366 = vpop.f32.mrf.mxu0
    %v367 = vadd.f32 %v344, %v366
    %368 = vmatmul.f32.gmra.mxu0 %v250
    %v369 = vpop.f32.mrf.mxu0
    %v370 = vadd.f32 %v347, %v369
    %371 = vdwg.mxu0
    %v372 = vmax.f32 %v367, 0.0
    %v373 = vmax.f32 %v370, 0.0
    %374 = vst [vmem:[#allocation4] sm:$0xff] %v372
    %375 = vst [vmem:[#allocation4 + $0x8] sm:$0xff] %v373
    %v376 = vld [vmem:[#allocation4] ss:$2 sm:$0xff]
    %s377 = scalar_lea.vmem [#allocation4], 1
    %v378 = vld [vmem:[%s377] ss:$2 sm:$0xff]
    %v379 = vmax.f32 %v376, %v378
    %380 = vrot.lane.b32.xlu0 %v379, 112
    %v381 = vpop.permute.xlu0 %380
    %v382 = vmax.f32 %v379, %v381
    %383 = vst [vmem:[#allocation5] sm:$0xff] %v382
    %v384 = vld [vmem:[#allocation5] ss:$4 sm:$0x3]
    %s385 = scalar_lea.vmem [#allocation5], 1
    %v386 = vld [vmem:[%s385] ss:$4 sm:$0x3]
    %s387 = scalar_lea.vmem [#allocation5], 2
    %v388 = vld [vmem:[%s387] ss:$4 sm:$0x3]
    %s389 = scalar_lea.vmem [#allocation5], 3
    %v390 = vld [vmem:[%s389] ss:$4 sm:$0x3]
    %v391 = vld [vmem:[#allocation9] sm:$0xff]
    %v392 = vld [vmem:[#allocation9 + $0x8] sm:$0xff]
    %v393 = vld [vmem:[#allocation9 + $0x10] sm:$0xff]
    %v394 = vld [vmem:[#allocation9 + $0x18] sm:$0xff]
    %v395 = vld [vmem:[#allocation9 + $0x20] sm:$0xff]
    %v396 = vld [vmem:[#allocation9 + $0x28] sm:$0xff]
    %v397 = vld [vmem:[#allocation9 + $0x30] sm:$0xff]
    %v398 = vld [vmem:[#allocation9 + $0x38] sm:$0xff]
    %v399 = vld [vmem:[#allocation9 + $0x40] sm:$0xff]
    %v400 = vld [vmem:[#allocation9 + $0x48] sm:$0xff]
    %v401 = vld [vmem:[#allocation9 + $0x50] sm:$0xff]
    %v402 = vld [vmem:[#allocation9 + $0x58] sm:$0xff]
    %v403 = vld [vmem:[#allocation9 + $0x60] sm:$0xff]
    %v404 = vld [vmem:[#allocation9 + $0x68] sm:$0xff]
    %v405 = vld [vmem:[#allocation9 + $0x70] sm:$0xff]
    %v406 = vld [vmem:[#allocation9 + $0x78] sm:$0xff]
    %v407 = vld [vmem:[#allocation9 + $0x80] sm:$0xff]
    %v408 = vld [vmem:[#allocation9 + $0x88] sm:$0xff]
    %v409 = vld [vmem:[#allocation9 + $0x90] sm:$0xff]
    %v410 = vld [vmem:[#allocation9 + $0x98] sm:$0xff]
    %v411 = vld [vmem:[#allocation9 + $0xa0] sm:$0xff]
    %v412 = vld [vmem:[#allocation9 + $0xa8] sm:$0xff]
    %v413 = vld [vmem:[#allocation9 + $0xb0] sm:$0xff]
    %v414 = vld [vmem:[#allocation9 + $0xb8] sm:$0xff]
    %v415 = vld [vmem:[#allocation9 + $0xc0] sm:$0xff]
    %v416 = vld [vmem:[#allocation9 + $0xc8] sm:$0xff]
    %v417 = vld [vmem:[#allocation9 + $0xd0] sm:$0xff]
    %v418 = vld [vmem:[#allocation9 + $0xd8] sm:$0xff]
    %v419 = vld [vmem:[#allocation9 + $0xe0] sm:$0xff]
    %v420 = vld [vmem:[#allocation9 + $0xe8] sm:$0xff]
    %v421 = vld [vmem:[#allocation9 + $0xf0] sm:$0xff]
    %v422 = vld [vmem:[#allocation9 + $0xf8] sm:$0xff]
    %v423 = vld [vmem:[#allocation9 + $0x100] sm:$0xff]
    %v424 = vld [vmem:[#allocation9 + $0x108] sm:$0xff]
    %v425 = vld [vmem:[#allocation9 + $0x110] sm:$0xff]
    %v426 = vld [vmem:[#allocation9 + $0x118] sm:$0xff]
    %v427 = vld [vmem:[#allocation9 + $0x120] sm:$0xff]
    %v428 = vld [vmem:[#allocation9 + $0x128] sm:$0xff]
    %v429 = vld [vmem:[#allocation9 + $0x130] sm:$0xff]
    %v430 = vld [vmem:[#allocation9 + $0x138] sm:$0xff]
    %v431 = vld [vmem:[#allocation9 + $0x140] sm:$0xff]
    %v432 = vld [vmem:[#allocation9 + $0x148] sm:$0xff]
    %v433 = vld [vmem:[#allocation9 + $0x150] sm:$0xff]
    %v434 = vld [vmem:[#allocation9 + $0x158] sm:$0xff]
    %v435 = vld [vmem:[#allocation9 + $0x160] sm:$0xff]
    %v436 = vld [vmem:[#allocation9 + $0x168] sm:$0xff]
    %v437 = vld [vmem:[#allocation9 + $0x170] sm:$0xff]
    %v438 = vld [vmem:[#allocation9 + $0x178] sm:$0xff]
    %v439 = vld [vmem:[#allocation9 + $0x180] sm:$0xff]
    %v440 = vld [vmem:[#allocation9 + $0x188] sm:$0xff]
    %v441 = vld [vmem:[#allocation9 + $0x190] sm:$0xff]
    %v442 = vld [vmem:[#allocation9 + $0x198] sm:$0xff]
    %v443 = vld [vmem:[#allocation9 + $0x1a0] sm:$0xff]
    %v444 = vld [vmem:[#allocation9 + $0x1a8] sm:$0xff]
    %v445 = vld [vmem:[#allocation9 + $0x1b0] sm:$0xff]
    %v446 = vld [vmem:[#allocation9 + $0x1b8] sm:$0xff]
    %v447 = vld [vmem:[#allocation9 + $0x1c0] sm:$0xff]
    %v448 = vld [vmem:[#allocation9 + $0x1c8] sm:$0xff]
    %v449 = vld [vmem:[#allocation9 + $0x1d0] sm:$0xff]
    %v450 = vld [vmem:[#allocation9 + $0x1d8] sm:$0xff]
    %v451 = vld [vmem:[#allocation9 + $0x1e0] sm:$0xff]
    %v452 = vld [vmem:[#allocation9 + $0x1e8] sm:$0xff]
    %v453 = vld [vmem:[#allocation9 + $0x1f0] sm:$0xff]
    %v454 = vld [vmem:[#allocation9 + $0x1f8] sm:$0xff]
    %v455 = vld [vmem:[%s6] sm:$0x1]
    %v457 = vperm.slane %v455, 0
    %459 = vmatpush.msra.mxu0 %v406
    %460 = vmatpush.msra.mxu0 %v405
    %461 = vmatpush.msra.mxu0 %v404
    %462 = vmatpush.msra.mxu0 %v403
    %463 = vmatpush.msra.mxu0 %v402
    %464 = vmatpush.msra.mxu0 %v401
    %465 = vmatpush.msra.mxu0 %v400
    %466 = vmatpush.msra.mxu0 %v399
    %467 = vmatpush.msra.mxu0 %v398
    %468 = vmatpush.msra.mxu0 %v397
    %469 = vmatpush.msra.mxu0 %v396
    %470 = vmatpush.msra.mxu0 %v395
    %471 = vmatpush.msra.mxu0 %v394
    %472 = vmatpush.msra.mxu0 %v393
    %473 = vmatpush.msra.mxu0 %v392
    %474 = vmatpush.msra.mxu0 %v391
    %475 = vmatmul.f32.gmra.mxu0 %v384
    %v476 = vpop.f32.mrf.mxu0
    %v477 = vadd.f32 %v457, %v476
    %478 = vdwg.mxu0
    %479 = vmatpush.msra.mxu0 %v422
    %480 = vmatpush.msra.mxu0 %v421
    %481 = vmatpush.msra.mxu0 %v420
    %482 = vmatpush.msra.mxu0 %v419
    %483 = vmatpush.msra.mxu0 %v418
    %484 = vmatpush.msra.mxu0 %v417
    %485 = vmatpush.msra.mxu0 %v416
    %486 = vmatpush.msra.mxu0 %v415
    %487 = vmatpush.msra.mxu0 %v414
    %488 = vmatpush.msra.mxu0 %v413
    %489 = vmatpush.msra.mxu0 %v412
    %490 = vmatpush.msra.mxu0 %v411
    %491 = vmatpush.msra.mxu0 %v410
    %492 = vmatpush.msra.mxu0 %v409
    %493 = vmatpush.msra.mxu0 %v408
    %494 = vmatpush.msra.mxu0 %v407
    %495 = vmatmul.f32.gmra.mxu0 %v386
    %v496 = vpop.f32.mrf.mxu0
    %v497 = vadd.f32 %v477, %v496
    %498 = vdwg.mxu0
    %499 = vmatpush.msra.mxu0 %v438
    %500 = vmatpush.msra.mxu0 %v437
    %501 = vmatpush.msra.mxu0 %v436
    %502 = vmatpush.msra.mxu0 %v435
    %503 = vmatpush.msra.mxu0 %v434
    %504 = vmatpush.msra.mxu0 %v433
    %505 = vmatpush.msra.mxu0 %v432
    %506 = vmatpush.msra.mxu0 %v431
    %507 = vmatpush.msra.mxu0 %v430
    %508 = vmatpush.msra.mxu0 %v429
    %509 = vmatpush.msra.mxu0 %v428
    %510 = vmatpush.msra.mxu0 %v427
    %511 = vmatpush.msra.mxu0 %v426
    %512 = vmatpush.msra.mxu0 %v425
    %513 = vmatpush.msra.mxu0 %v424
    %514 = vmatpush.msra.mxu0 %v423
    %515 = vmatmul.f32.gmra.mxu0 %v388
    %v516 = vpop.f32.mrf.mxu0
    %v517 = vadd.f32 %v497, %v516
    %518 = vdwg.mxu0
    %519 = vmatpush.msra.mxu0 %v454
    %520 = vmatpush.msra.mxu0 %v453
    %521 = vmatpush.msra.mxu0 %v452
    %522 = vmatpush.msra.mxu0 %v451
    %523 = vmatpush.msra.mxu0 %v450
    %524 = vmatpush.msra.mxu0 %v449
    %525 = vmatpush.msra.mxu0 %v448
    %526 = vmatpush.msra.mxu0 %v447
    %527 = vmatpush.msra.mxu0 %v446
    %528 = vmatpush.msra.mxu0 %v445
    %529 = vmatpush.msra.mxu0 %v444
    %530 = vmatpush.msra.mxu0 %v443
    %531 = vmatpush.msra.mxu0 %v442
    %532 = vmatpush.msra.mxu0 %v441
    %533 = vmatpush.msra.mxu0 %v440
    %534 = vmatpush.msra.mxu0 %v439
    %535 = vmatmul.f32.gmra.mxu0 %v390
    %v536 = vpop.f32.mrf.mxu0
    %v537 = vadd.f32 %v517, %v536
    %538 = vdwg.mxu0
    %v539 = vmax.f32 %v537, 0.0
    %v540 = vld [vmem:[%s7] sm:$0xff]
    %v541 = vld [vmem:[%s7 + $0x8] sm:$0xff]
    %v542 = vld [vmem:[%s7 + $0x10] sm:$0xff]
    %v543 = vld [vmem:[%s7 + $0x18] sm:$0xff]
    %v544 = vld [vmem:[%s8] sm:$0x1]
    %v546 = vperm.slane %v544, 0
    %vm548 = vcmask 261120
    %v550 = vsel %vm548, %v539, 0
    %552 = vmatpush.msra.mxu0 0.0
    %553 = vmatpush.msra.mxu0 0.0
    %554 = vmatpush.msra.mxu0 0.0
    %555 = vmatpush.msra.mxu0 0.0
    %556 = vmatpush.msra.mxu0 0.0
    %557 = vmatpush.msra.mxu0 0.0
    %558 = vmatpush.msra.mxu0 0.0
    %559 = vmatpush.msra.mxu0 0.0
    %560 = vmatpush.msra.mxu0 0.0
    %561 = vmatpush.msra.mxu0 0.0
    %562 = vmatpush.msra.mxu0 0.0
    %563 = vmatpush.msra.mxu0 0.0
    %564 = vmatpush.msra.mxu0 %v543
    %565 = vmatpush.msra.mxu0 %v542
    %566 = vmatpush.msra.mxu0 %v541
    %567 = vmatpush.msra.mxu0 %v540
    %568 = vmatmul.f32.gmra.mxu0 %v550
    %v569 = vpop.f32.mrf.mxu0
    %v570 = vadd.f32 %v546, %v569
    %571 = vdwg.mxu0
    %vm572 = vcmask 74752
    %573 = vst.msk [vmem:[#allocation11] sm:$0x3] %vm572, %v570
    // Predicated region
    $region46: #{dnn_forward.1} parent=1 // pred_check
      _
    $region47: #{dnn_forward.1} parent=1 // pred_check_branch
      %575 = sbr.rel (0) target = $region49
    $region48: #{dnn_forward.1} parent=1 // pred_region
      %577 = vsyncadd [#allocation8], 0
      %s579 = sshll.u32 [#allocation11], 4
      %s580 = int_to_ptr.vmem [resolvable:$true] %s579
      %s581 = sshll.u32 %s9, 4
      %s582 = int_to_ptr.hbm [resolvable:$true] %s581
      %584 = dma.vmem_to_hbm [thread:$0]  %s580, 32, %s582, [#allocation8]
    $region49: #{dnn_forward.1} parent=1 // pred_fallthru
      _
    // Predicated region
    $region50: #{dnn_forward.1} parent=1 // pred_check
      _
    $region51: #{dnn_forward.1} parent=1 // pred_check_branch
      %586 = sbr.rel (0) target = $region53
    $region52: #{dnn_forward.1} parent=1 // pred_region
      %588 = dma.done [#allocation8], 32
    $region53: #{dnn_forward.1} parent=1 // pred_fallthru
      _
    %589 = vsyncpa [#allocation7], 1
    %590 = vsyncpa [#allocation10], 1
    %591 = vsyncpa [#allocation8], 1

</llo_original>
